<compile_context>
chip_gen: v6e
topology: v6e:2x2x1
jax: 0.10.0
libtpu: 0.0.40
codegen_flags: <defaults>
</compile_context>

<pallas_src>
import functools

import jax
import jax.numpy as jnp
from jax import lax
from jax.experimental import pallas as pl
from jax.experimental.pallas import tpu as pltpu


# ---------------------------------------------------------------------------
# Small-f path: manual DMA gather/scatter of R selected rows per grid step.
# ---------------------------------------------------------------------------
def _gather_flip_kernel(R, sel_ref, data_ref, out_ref, buf_ref, in_sems, out_sems):
    """Negate R selected rows per grid step.

    sel_ref : SMEM int32[f_pad]  (scalar-prefetched row indices)
    data_ref: ANY  (n_ts, L)     raw HBM, aliased with out_ref
    out_ref : ANY  (n_ts, L)
    buf_ref : VMEM (R, L) scratch
    """
    g = pl.program_id(0)
    base = g * R

    # Gather R rows.  Padding duplicates (last group only) are safe: all reads
    # complete before any write of this group starts, and each row is touched
    # by exactly one group.
    gathers = []
    for r in range(R):
        idx = sel_ref[base + r]
        cp = pltpu.make_async_copy(
            data_ref.at[pl.ds(idx, 1), :], buf_ref.at[pl.ds(r, 1), :], in_sems.at[r])
        cp.start()
        gathers.append(cp)
    for cp in gathers:
        cp.wait()

    # Single VALU negate per vreg on a sublane/lane-dense tile.
    buf_ref[...] = -buf_ref[...]

    # Scatter back to the aliased output; untouched rows keep their values.
    scatters = []
    for r in range(R):
        idx = sel_ref[base + r]
        cp = pltpu.make_async_copy(
            buf_ref.at[pl.ds(r, 1), :], out_ref.at[pl.ds(idx, 1), :], out_sems.at[r])
        cp.start()
        scatters.append(cp)
    for cp in scatters:
        cp.wait()


def _gather_flip(data, selection, f):
    n_ts, L = data.shape
    itemsize = jnp.dtype(data.dtype).itemsize
    # R rows per step restores full sublane utilization and amortizes the
    # per-grid-step pipeline overhead.
    R = min({4: 8, 2: 16, 1: 32}.get(itemsize, 8), f)
    num_groups = (f + R - 1) // R
    f_pad = num_groups * R
    if f_pad > f:
        # Pad with the last selected row; the duplicates land in the same
        # (last) group as the original occurrence, so the result is identical.
        selection = jnp.concatenate(
            [selection, jnp.full((f_pad - f,), selection[f - 1], jnp.int32)])

    kernel = functools.partial(_gather_flip_kernel, R)
    return pl.pallas_call(
        kernel,
        out_shape=jax.ShapeDtypeStruct((n_ts, L), data.dtype),
        grid_spec=pltpu.PrefetchScalarGridSpec(
            num_scalar_prefetch=1,            # row-selection table in SMEM
            grid=(num_groups,),
            in_specs=[pl.BlockSpec(memory_space=pl.ANY)],
            out_specs=pl.BlockSpec(memory_space=pl.ANY),
            scratch_shapes=[
                pltpu.VMEM((R, L), data.dtype),
                pltpu.SemaphoreType.DMA((R,)),
                pltpu.SemaphoreType.DMA((R,)),
            ],
        ),
        # `data` is call-arg index 1 (after the scalar-prefetch selection);
        # aliasing it to output 0 means unselected rows never move when the
        # caller donates the buffer.
        input_output_aliases={1: 0},
        compiler_params=pltpu.CompilerParams(
            dimension_semantics=("arbitrary",),
        ),
        cost_estimate=pl.CostEstimate(
            flops=f_pad * L,
            transcendentals=0,
            bytes_accessed=2 * f_pad * L * itemsize,
        ),
    )(selection, data)


# ---------------------------------------------------------------------------
# Large-f path: dense lane-dense sweep, multiply each row by +/-1.
# ---------------------------------------------------------------------------
def _dense_flip_kernel(sign_ref, x_ref, o_ref):
    # One vmul per vreg; sign broadcasts along the lane axis.
    o_ref[...] = x_ref[...] * sign_ref[...]


def _dense_flip(data, selection):
    n_ts, L = data.shape
    sign = jnp.ones((n_ts, 1), data.dtype).at[selection].set(-1)

    # Row tile: a multiple of 8 sublanes when possible, else the full extent.
    if n_ts % 8 == 0:
        tr = 8
        while tr * 2 <= min(n_ts, 256) and n_ts % (tr * 2) == 0:
            tr *= 2
    else:
        tr = n_ts
    # TODO(synk): tile the lane axis as a second grid dim for very large L
    # (keeps (tr, tc) blocks under v7x's 64 MiB VMEM); full-L blocks are fine
    # at the sizes exercised here.
    return pl.pallas_call(
        _dense_flip_kernel,
        out_shape=jax.ShapeDtypeStruct((n_ts, L), data.dtype),
        grid=(n_ts // tr,),
        in_specs=[pl.BlockSpec((tr, 1), lambda i: (i, 0)),
                  pl.BlockSpec((tr, L), lambda i: (i, 0))],
        out_specs=pl.BlockSpec((tr, L), lambda i: (i, 0)),
        input_output_aliases={1: 0},
        compiler_params=pltpu.CompilerParams(
            dimension_semantics=("parallel",),
        ),
    )(sign, data)


# ---------------------------------------------------------------------------
# Wrapper.  `data` is donated (in-place semantics, like the PyTorch module);
# pass a copy if the original must stay live.  L should ideally be a multiple
# of 128 for lane-dense stores (correct either way).
# ---------------------------------------------------------------------------
@functools.partial(jax.jit, static_argnames=("p", "f"), donate_argnums=(0,))
def random_amplitude_flip(data, key, p=0.5, f=1):
    if data.ndim != 2:
        raise ValueError("data must have shape (n_ts, L)")
    n_ts, _ = data.shape
    f = int(f)
    if f <= 0:
        return data
    if f > n_ts:
        raise ValueError("f must be <= n_ts")

    k_gate, k_sel = jax.random.split(key)
    flip = jax.random.uniform(k_gate, ()) < p                       # torch.rand(1) < p
    selection = jax.random.permutation(k_sel, n_ts)[:f].astype(jnp.int32)

    def _flip_branch(d):
        if 4 * f >= n_ts:                      # many rows: dense sweep wins
            return _dense_flip(d, selection)
        return _gather_flip(d, selection, f)   # few rows: O(f*L) gather

    # No-flip branch does zero kernel work / traffic.
    return lax.cond(flip, _flip_branch, lambda d: d, data)


def _reference(data, key, p, f):
    """Pure-JAX mirror of the wrapper's RNG usage + semantics."""
    n_ts = data.shape[0]
    k_gate, k_sel = jax.random.split(key)
    flip = jax.random.uniform(k_gate, ()) < p
    sel = jax.random.permutation(k_sel, n_ts)[:f]
    row_mask = jnp.zeros((n_ts,), dtype=bool).at[sel].set(True)
    return jnp.where((row_mask & flip)[:, None], -data, data)


if __name__ == "__main__":
    key = jax.random.PRNGKey(0)
    k_data, k_aug = jax.random.split(key)

    n_ts, L = 32, 256  # 32 time series of length 256 (L multiple of 128)
    data = jax.random.normal(k_data, (n_ts, L), dtype=jnp.float32)

    # (p, f): forced flip via gather path, forced identity, default config,
    # forced flip via dense path.
    for p, f in [(1.0, 3), (0.0, 2), (0.5, 1), (1.0, 16)]:
        ref = _reference(data, k_aug, p, f)
        # `data` stays live across configs, so pass a copy into the donating
        # wrapper (mirrors callers that need the pre-augmentation array).
        out = random_amplitude_flip(jnp.copy(data), k_aug, p=p, f=f)
        out = jax.block_until_ready(out)

        assert out.shape == data.shape and out.dtype == data.dtype
        assert jnp.allclose(out, ref), f"mismatch vs reference (p={p}, f={f})"

    print("KERNEL_OK")
</pallas_src>

<mosaic_0001>
module attributes {stable_mosaic.version = 11 : i64} {
  func.func @_gather_flip_kernel(%arg0: i32, %arg1: memref<3xi32, #tpu.memory_space<smem>>, %arg2: memref<32x256xf32, #tpu.memory_space<any>>, %arg3: memref<32x256xf32, #tpu.memory_space<any>>, %arg4: memref<3x256xf32, #tpu.memory_space<vmem>>, %arg5: memref<3x!tpu.dma_semaphore, #tpu.memory_space<semaphore_mem>>, %arg6: memref<3x!tpu.dma_semaphore, #tpu.memory_space<semaphore_mem>>) attributes {dimension_semantics = [#tpu.dimension_semantics<arbitrary>], iteration_bounds = array<i64: 1>, scalar_prefetch = 1 : i64, scratch_operands = 3 : i64, tpu.core_type = #tpu.core_type<tc>, window_params = [{}, {}]} {
    %c3_i32 = arith.constant 3 : i32
    %0 = arith.muli %arg0, %c3_i32 : i32
    %c0_i32 = arith.constant 0 : i32
    %1 = arith.addi %0, %c0_i32 : i32
    %2 = arith.index_cast %1 : i32 to index
    %3 = memref.load %arg1[%2] : memref<3xi32, #tpu.memory_space<smem>>
    %c0_i32_0 = arith.constant 0 : i32
    %c0_i32_1 = arith.constant 0 : i32
    %4 = tpu.memref_slice %arg2[%3, %c0_i32_1] : memref<32x256xf32, #tpu.memory_space<any>> -> memref<1x256xf32, #tpu.memory_space<any>>
    %c0_i32_2 = arith.constant 0 : i32
    %c0_i32_3 = arith.constant 0 : i32
    %5 = tpu.memref_slice %arg4[%c0_i32_2, %c0_i32_3] : memref<3x256xf32, #tpu.memory_space<vmem>> -> memref<1x256xf32, #tpu.memory_space<vmem>>
    %6 = tpu.memref_slice %arg5[%c0_i32_0] : memref<3x!tpu.dma_semaphore, #tpu.memory_space<semaphore_mem>> -> memref<1x!tpu.dma_semaphore, #tpu.memory_space<semaphore_mem>>
    %7 = tpu.memref_squeeze %6 : memref<1x!tpu.dma_semaphore, #tpu.memory_space<semaphore_mem>> -> memref<!tpu.dma_semaphore, #tpu.memory_space<semaphore_mem>>
    tpu.enqueue_dma source(%4 : memref<1x256xf32, #tpu.memory_space<any>>) target(%5 : memref<1x256xf32, #tpu.memory_space<vmem>>) target_semaphore(%7 : memref<!tpu.dma_semaphore, #tpu.memory_space<semaphore_mem>>)
    %c1_i32 = arith.constant 1 : i32
    %8 = arith.addi %0, %c1_i32 : i32
    %9 = arith.index_cast %8 : i32 to index
    %10 = memref.load %arg1[%9] : memref<3xi32, #tpu.memory_space<smem>>
    %c1_i32_4 = arith.constant 1 : i32
    %c0_i32_5 = arith.constant 0 : i32
    %11 = tpu.memref_slice %arg2[%10, %c0_i32_5] : memref<32x256xf32, #tpu.memory_space<any>> -> memref<1x256xf32, #tpu.memory_space<any>>
    %c1_i32_6 = arith.constant 1 : i32
    %c0_i32_7 = arith.constant 0 : i32
    %12 = tpu.memref_slice %arg4[%c1_i32_6, %c0_i32_7] : memref<3x256xf32, #tpu.memory_space<vmem>> -> memref<1x256xf32, #tpu.memory_space<vmem>>
    %13 = tpu.memref_slice %arg5[%c1_i32_4] : memref<3x!tpu.dma_semaphore, #tpu.memory_space<semaphore_mem>> -> memref<1x!tpu.dma_semaphore, #tpu.memory_space<semaphore_mem>>
    %14 = tpu.memref_squeeze %13 : memref<1x!tpu.dma_semaphore, #tpu.memory_space<semaphore_mem>> -> memref<!tpu.dma_semaphore, #tpu.memory_space<semaphore_mem>>
    tpu.enqueue_dma source(%11 : memref<1x256xf32, #tpu.memory_space<any>>) target(%12 : memref<1x256xf32, #tpu.memory_space<vmem>>) target_semaphore(%14 : memref<!tpu.dma_semaphore, #tpu.memory_space<semaphore_mem>>)
    %c2_i32 = arith.constant 2 : i32
    %15 = arith.addi %0, %c2_i32 : i32
    %16 = arith.index_cast %15 : i32 to index
    %17 = memref.load %arg1[%16] : memref<3xi32, #tpu.memory_space<smem>>
    %c2_i32_8 = arith.constant 2 : i32
    %c0_i32_9 = arith.constant 0 : i32
    %18 = tpu.memref_slice %arg2[%17, %c0_i32_9] : memref<32x256xf32, #tpu.memory_space<any>> -> memref<1x256xf32, #tpu.memory_space<any>>
    %c2_i32_10 = arith.constant 2 : i32
    %c0_i32_11 = arith.constant 0 : i32
    %19 = tpu.memref_slice %arg4[%c2_i32_10, %c0_i32_11] : memref<3x256xf32, #tpu.memory_space<vmem>> -> memref<1x256xf32, #tpu.memory_space<vmem>>
    %20 = tpu.memref_slice %arg5[%c2_i32_8] : memref<3x!tpu.dma_semaphore, #tpu.memory_space<semaphore_mem>> -> memref<1x!tpu.dma_semaphore, #tpu.memory_space<semaphore_mem>>
    %21 = tpu.memref_squeeze %20 : memref<1x!tpu.dma_semaphore, #tpu.memory_space<semaphore_mem>> -> memref<!tpu.dma_semaphore, #tpu.memory_space<semaphore_mem>>
    tpu.enqueue_dma source(%18 : memref<1x256xf32, #tpu.memory_space<any>>) target(%19 : memref<1x256xf32, #tpu.memory_space<vmem>>) target_semaphore(%21 : memref<!tpu.dma_semaphore, #tpu.memory_space<semaphore_mem>>)
    %c0_i32_12 = arith.constant 0 : i32
    %c0_i32_13 = arith.constant 0 : i32
    %22 = tpu.memref_slice %arg2[%3, %c0_i32_13] : memref<32x256xf32, #tpu.memory_space<any>> -> memref<1x256xf32, #tpu.memory_space<any>>
    %c0_i32_14 = arith.constant 0 : i32
    %c0_i32_15 = arith.constant 0 : i32
    %23 = tpu.memref_slice %arg4[%c0_i32_14, %c0_i32_15] : memref<3x256xf32, #tpu.memory_space<vmem>> -> memref<1x256xf32, #tpu.memory_space<vmem>>
    %24 = tpu.memref_slice %arg5[%c0_i32_12] : memref<3x!tpu.dma_semaphore, #tpu.memory_space<semaphore_mem>> -> memref<1x!tpu.dma_semaphore, #tpu.memory_space<semaphore_mem>>
    %25 = tpu.memref_squeeze %24 : memref<1x!tpu.dma_semaphore, #tpu.memory_space<semaphore_mem>> -> memref<!tpu.dma_semaphore, #tpu.memory_space<semaphore_mem>>
    tpu.wait_dma2 semaphore(%25 : memref<!tpu.dma_semaphore, #tpu.memory_space<semaphore_mem>>) src(%22 : memref<1x256xf32, #tpu.memory_space<any>>) dst(%23 : memref<1x256xf32, #tpu.memory_space<vmem>>)
    %c1_i32_16 = arith.constant 1 : i32
    %c0_i32_17 = arith.constant 0 : i32
    %26 = tpu.memref_slice %arg2[%10, %c0_i32_17] : memref<32x256xf32, #tpu.memory_space<any>> -> memref<1x256xf32, #tpu.memory_space<any>>
    %c1_i32_18 = arith.constant 1 : i32
    %c0_i32_19 = arith.constant 0 : i32
    %27 = tpu.memref_slice %arg4[%c1_i32_18, %c0_i32_19] : memref<3x256xf32, #tpu.memory_space<vmem>> -> memref<1x256xf32, #tpu.memory_space<vmem>>
    %28 = tpu.memref_slice %arg5[%c1_i32_16] : memref<3x!tpu.dma_semaphore, #tpu.memory_space<semaphore_mem>> -> memref<1x!tpu.dma_semaphore, #tpu.memory_space<semaphore_mem>>
    %29 = tpu.memref_squeeze %28 : memref<1x!tpu.dma_semaphore, #tpu.memory_space<semaphore_mem>> -> memref<!tpu.dma_semaphore, #tpu.memory_space<semaphore_mem>>
    tpu.wait_dma2 semaphore(%29 : memref<!tpu.dma_semaphore, #tpu.memory_space<semaphore_mem>>) src(%26 : memref<1x256xf32, #tpu.memory_space<any>>) dst(%27 : memref<1x256xf32, #tpu.memory_space<vmem>>)
    %c2_i32_20 = arith.constant 2 : i32
    %c0_i32_21 = arith.constant 0 : i32
    %30 = tpu.memref_slice %arg2[%17, %c0_i32_21] : memref<32x256xf32, #tpu.memory_space<any>> -> memref<1x256xf32, #tpu.memory_space<any>>
    %c2_i32_22 = arith.constant 2 : i32
    %c0_i32_23 = arith.constant 0 : i32
    %31 = tpu.memref_slice %arg4[%c2_i32_22, %c0_i32_23] : memref<3x256xf32, #tpu.memory_space<vmem>> -> memref<1x256xf32, #tpu.memory_space<vmem>>
    %32 = tpu.memref_slice %arg5[%c2_i32_20] : memref<3x!tpu.dma_semaphore, #tpu.memory_space<semaphore_mem>> -> memref<1x!tpu.dma_semaphore, #tpu.memory_space<semaphore_mem>>
    %33 = tpu.memref_squeeze %32 : memref<1x!tpu.dma_semaphore, #tpu.memory_space<semaphore_mem>> -> memref<!tpu.dma_semaphore, #tpu.memory_space<semaphore_mem>>
    tpu.wait_dma2 semaphore(%33 : memref<!tpu.dma_semaphore, #tpu.memory_space<semaphore_mem>>) src(%30 : memref<1x256xf32, #tpu.memory_space<any>>) dst(%31 : memref<1x256xf32, #tpu.memory_space<vmem>>)
    %c0 = arith.constant 0 : index
    %c0_24 = arith.constant 0 : index
    %34 = vector.load %arg4[%c0, %c0_24] : memref<3x256xf32, #tpu.memory_space<vmem>>, vector<3x256xf32>
    %cst = arith.constant 0.000000e+00 : f32
    %35 = vector.broadcast %cst : f32 to vector<3x256xf32>
    %36 = arith.subf %35, %34 : vector<3x256xf32>
    %c0_25 = arith.constant 0 : index
    %c0_26 = arith.constant 0 : index
    %37 = vector.load %arg4[%c0_25, %c0_26] : memref<3x256xf32, #tpu.memory_space<vmem>>, vector<3x256xf32>
    tpu.vector_store %arg4[%c0_25, %c0_26], %36 {strides = array<i32>} : memref<3x256xf32, #tpu.memory_space<vmem>>, vector<3x256xf32>,
    %c0_i32_27 = arith.constant 0 : i32
    %38 = arith.addi %0, %c0_i32_27 : i32
    %39 = arith.index_cast %38 : i32 to index
    %40 = memref.load %arg1[%39] : memref<3xi32, #tpu.memory_space<smem>>
    %c0_i32_28 = arith.constant 0 : i32
    %c0_i32_29 = arith.constant 0 : i32
    %c0_i32_30 = arith.constant 0 : i32
    %41 = tpu.memref_slice %arg4[%c0_i32_29, %c0_i32_30] : memref<3x256xf32, #tpu.memory_space<vmem>> -> memref<1x256xf32, #tpu.memory_space<vmem>>
    %c0_i32_31 = arith.constant 0 : i32
    %42 = tpu.memref_slice %arg3[%40, %c0_i32_31] : memref<32x256xf32, #tpu.memory_space<any>> -> memref<1x256xf32, #tpu.memory_space<any>>
    %43 = tpu.memref_slice %arg6[%c0_i32_28] : memref<3x!tpu.dma_semaphore, #tpu.memory_space<semaphore_mem>> -> memref<1x!tpu.dma_semaphore, #tpu.memory_space<semaphore_mem>>
    %44 = tpu.memref_squeeze %43 : memref<1x!tpu.dma_semaphore, #tpu.memory_space<semaphore_mem>> -> memref<!tpu.dma_semaphore, #tpu.memory_space<semaphore_mem>>
    tpu.enqueue_dma source(%41 : memref<1x256xf32, #tpu.memory_space<vmem>>) target(%42 : memref<1x256xf32, #tpu.memory_space<any>>) target_semaphore(%44 : memref<!tpu.dma_semaphore, #tpu.memory_space<semaphore_mem>>)
    %c1_i32_32 = arith.constant 1 : i32
    %45 = arith.addi %0, %c1_i32_32 : i32
    %46 = arith.index_cast %45 : i32 to index
    %47 = memref.load %arg1[%46] : memref<3xi32, #tpu.memory_space<smem>>
    %c1_i32_33 = arith.constant 1 : i32
    %c1_i32_34 = arith.constant 1 : i32
    %c0_i32_35 = arith.constant 0 : i32
    %48 = tpu.memref_slice %arg4[%c1_i32_34, %c0_i32_35] : memref<3x256xf32, #tpu.memory_space<vmem>> -> memref<1x256xf32, #tpu.memory_space<vmem>>
    %c0_i32_36 = arith.constant 0 : i32
    %49 = tpu.memref_slice %arg3[%47, %c0_i32_36] : memref<32x256xf32, #tpu.memory_space<any>> -> memref<1x256xf32, #tpu.memory_space<any>>
    %50 = tpu.memref_slice %arg6[%c1_i32_33] : memref<3x!tpu.dma_semaphore, #tpu.memory_space<semaphore_mem>> -> memref<1x!tpu.dma_semaphore, #tpu.memory_space<semaphore_mem>>
    %51 = tpu.memref_squeeze %50 : memref<1x!tpu.dma_semaphore, #tpu.memory_space<semaphore_mem>> -> memref<!tpu.dma_semaphore, #tpu.memory_space<semaphore_mem>>
    tpu.enqueue_dma source(%48 : memref<1x256xf32, #tpu.memory_space<vmem>>) target(%49 : memref<1x256xf32, #tpu.memory_space<any>>) target_semaphore(%51 : memref<!tpu.dma_semaphore, #tpu.memory_space<semaphore_mem>>)
    %c2_i32_37 = arith.constant 2 : i32
    %52 = arith.addi %0, %c2_i32_37 : i32
    %53 = arith.index_cast %52 : i32 to index
    %54 = memref.load %arg1[%53] : memref<3xi32, #tpu.memory_space<smem>>
    %c2_i32_38 = arith.constant 2 : i32
    %c2_i32_39 = arith.constant 2 : i32
    %c0_i32_40 = arith.constant 0 : i32
    %55 = tpu.memref_slice %arg4[%c2_i32_39, %c0_i32_40] : memref<3x256xf32, #tpu.memory_space<vmem>> -> memref<1x256xf32, #tpu.memory_space<vmem>>
    %c0_i32_41 = arith.constant 0 : i32
    %56 = tpu.memref_slice %arg3[%54, %c0_i32_41] : memref<32x256xf32, #tpu.memory_space<any>> -> memref<1x256xf32, #tpu.memory_space<any>>
    %57 = tpu.memref_slice %arg6[%c2_i32_38] : memref<3x!tpu.dma_semaphore, #tpu.memory_space<semaphore_mem>> -> memref<1x!tpu.dma_semaphore, #tpu.memory_space<semaphore_mem>>
    %58 = tpu.memref_squeeze %57 : memref<1x!tpu.dma_semaphore, #tpu.memory_space<semaphore_mem>> -> memref<!tpu.dma_semaphore, #tpu.memory_space<semaphore_mem>>
    tpu.enqueue_dma source(%55 : memref<1x256xf32, #tpu.memory_space<vmem>>) target(%56 : memref<1x256xf32, #tpu.memory_space<any>>) target_semaphore(%58 : memref<!tpu.dma_semaphore, #tpu.memory_space<semaphore_mem>>)
    %c0_i32_42 = arith.constant 0 : i32
    %c0_i32_43 = arith.constant 0 : i32
    %c0_i32_44 = arith.constant 0 : i32
    %59 = tpu.memref_slice %arg4[%c0_i32_43, %c0_i32_44] : memref<3x256xf32, #tpu.memory_space<vmem>> -> memref<1x256xf32, #tpu.memory_space<vmem>>
    %c0_i32_45 = arith.constant 0 : i32
    %60 = tpu.memref_slice %arg3[%40, %c0_i32_45] : memref<32x256xf32, #tpu.memory_space<any>> -> memref<1x256xf32, #tpu.memory_space<any>>
    %61 = tpu.memref_slice %arg6[%c0_i32_42] : memref<3x!tpu.dma_semaphore, #tpu.memory_space<semaphore_mem>> -> memref<1x!tpu.dma_semaphore, #tpu.memory_space<semaphore_mem>>
    %62 = tpu.memref_squeeze %61 : memref<1x!tpu.dma_semaphore, #tpu.memory_space<semaphore_mem>> -> memref<!tpu.dma_semaphore, #tpu.memory_space<semaphore_mem>>
    tpu.wait_dma2 semaphore(%62 : memref<!tpu.dma_semaphore, #tpu.memory_space<semaphore_mem>>) src(%59 : memref<1x256xf32, #tpu.memory_space<vmem>>) dst(%60 : memref<1x256xf32, #tpu.memory_space<any>>)
    %c1_i32_46 = arith.constant 1 : i32
    %c1_i32_47 = arith.constant 1 : i32
    %c0_i32_48 = arith.constant 0 : i32
    %63 = tpu.memref_slice %arg4[%c1_i32_47, %c0_i32_48] : memref<3x256xf32, #tpu.memory_space<vmem>> -> memref<1x256xf32, #tpu.memory_space<vmem>>
    %c0_i32_49 = arith.constant 0 : i32
    %64 = tpu.memref_slice %arg3[%47, %c0_i32_49] : memref<32x256xf32, #tpu.memory_space<any>> -> memref<1x256xf32, #tpu.memory_space<any>>
    %65 = tpu.memref_slice %arg6[%c1_i32_46] : memref<3x!tpu.dma_semaphore, #tpu.memory_space<semaphore_mem>> -> memref<1x!tpu.dma_semaphore, #tpu.memory_space<semaphore_mem>>
    %66 = tpu.memref_squeeze %65 : memref<1x!tpu.dma_semaphore, #tpu.memory_space<semaphore_mem>> -> memref<!tpu.dma_semaphore, #tpu.memory_space<semaphore_mem>>
    tpu.wait_dma2 semaphore(%66 : memref<!tpu.dma_semaphore, #tpu.memory_space<semaphore_mem>>) src(%63 : memref<1x256xf32, #tpu.memory_space<vmem>>) dst(%64 : memref<1x256xf32, #tpu.memory_space<any>>)
    %c2_i32_50 = arith.constant 2 : i32
    %c2_i32_51 = arith.constant 2 : i32
    %c0_i32_52 = arith.constant 0 : i32
    %67 = tpu.memref_slice %arg4[%c2_i32_51, %c0_i32_52] : memref<3x256xf32, #tpu.memory_space<vmem>> -> memref<1x256xf32, #tpu.memory_space<vmem>>
    %c0_i32_53 = arith.constant 0 : i32
    %68 = tpu.memref_slice %arg3[%54, %c0_i32_53] : memref<32x256xf32, #tpu.memory_space<any>> -> memref<1x256xf32, #tpu.memory_space<any>>
    %69 = tpu.memref_slice %arg6[%c2_i32_50] : memref<3x!tpu.dma_semaphore, #tpu.memory_space<semaphore_mem>> -> memref<1x!tpu.dma_semaphore, #tpu.memory_space<semaphore_mem>>
    %70 = tpu.memref_squeeze %69 : memref<1x!tpu.dma_semaphore, #tpu.memory_space<semaphore_mem>> -> memref<!tpu.dma_semaphore, #tpu.memory_space<semaphore_mem>>
    tpu.wait_dma2 semaphore(%70 : memref<!tpu.dma_semaphore, #tpu.memory_space<semaphore_mem>>) src(%67 : memref<1x256xf32, #tpu.memory_space<vmem>>) dst(%68 : memref<1x256xf32, #tpu.memory_space<any>>)
    return
  }
}

</mosaic_0001>

<llo_original>
// kernel: branch_1_fun.1
$region0: #{branch_1_fun.1}
  #allocation0 [shape = 'u32[]', space=smem, size = 0x4, offset = 0x4, fixed_abs, tag = 'smem constant byte address 0x4 - core index']
  #allocation1 [shape = 'u32[144,128]{1,0:T(1,128)}', space=vmem, size = 0x12000, scoped, tag = 'internal scratch']
  #allocation2 [shape = 'f32[3,256]{1,0:T(4,128)}', space=vmem, size = 0x1000, scoped, tag = 'scratch operand']
  #allocation3 [shape = 's32[3]{0}', space=sflag, size = 0xc, scoped, tag = 'scratch operand']
  #allocation4 [shape = 's32[3]{0}', space=sflag, size = 0xc, scoped, tag = 'scratch operand']
  #allocation5 [shape = 's32[1]{0}', space=sflag, size = 0x4, scoped, tag = 'scoped memory for branch_1_fun.1']
  #allocation6 [shape = 'u8[512]{0}', space=smem, size = 0x200, scoped, tag = 'prefetched SMEM operand 0']
  #allocation7 [shape = 's32[]', space=sflag, size = 0x4, offset = 0, fixed_abs, tag = 'sflag constant byte address 0x0 - dummy sync flag']
  #allocation8 [shape = 's32[]', space=sflag, size = 0x4, offset = 0, fixed_abs, tag = 'sflag constant byte address 0x0 - dummy sync flag']
  #allocation9 [shape = 's32[]', space=sflag, size = 0x4, offset = 0, fixed_abs, tag = 'sflag constant byte address 0x0 - dummy sync flag']
  #allocation10 [shape = 's32[]', space=sflag, size = 0x4, offset = 0, fixed_abs, tag = 'sflag constant byte address 0x0 - dummy sync flag']
  #allocation11 [shape = 's32[]', space=sflag, size = 0x4, offset = 0, fixed_abs, tag = 'sflag constant byte address 0x0 - dummy sync flag']
  #allocation12 [shape = 's32[]', space=sflag, size = 0x4, offset = 0, fixed_abs, tag = 'sflag constant byte address 0x0 - dummy sync flag']
  %s0 = inlined_call_operand.vmem [shape: s32[3], index: 0, kind: input, shape index: {}]
  %s1 = inlined_call_operand.hbm [shape: f32[32,256], index: 1, kind: input, shape index: {}, may-alias: {1,2}]
  %s2 = inlined_call_operand.hbm [shape: f32[32,256], index: 2, kind: output, shape index: {}, may-alias: {1,2}]
  %s3 = sld [smem:[#allocation0]]
  $region2: #{branch_1_fun.1} parent=0
    _
  %s5 = ssub.s32 1, %s3
  %s6 = scalar_select 0, %s5, %s3
  %s7 = sshll.u32 %s0, 4
  %s8 = int_to_ptr.vmem [resolvable:$true] %s7
  %10 = dma.vmem_to_smem %s8, 16, [#allocation6], [#allocation5]
  %11 = dma.done [#allocation5], 16
  %12 = sfence
  %s13 = smul.u32 0, 3
  %s14 = sld [smem:[#allocation6 + %s13]]
  %s15 = sshrl.u32 %s14, 3
  %s16 = sand.u32 %s14, 7
  %s17 = smul.u32 %s15, 16
  %s18 = sadd.s32 %s16, %s17
  %s19 = smul.addr %s18, 16
  %s20 = scalar_lea.hbm %s1, %s19
  %s22 = sshll.u32 [#allocation2], 4
  %s23 = int_to_ptr.vmem [resolvable:$true] %s22
  %25 = dma.hbm_to_vmem [thread:$0]  %s20, 32, %s23, [#allocation3], 128, 64, 1
  %s26 = sadd.s32 %s13, 1
  %s27 = sld [smem:[#allocation6 + %s26]]
  %s28 = sshrl.u32 %s27, 3
  %s29 = sand.u32 %s27, 7
  %s30 = smul.u32 %s28, 16
  %s31 = sadd.s32 %s29, %s30
  %s32 = smul.addr %s31, 16
  %s33 = scalar_lea.hbm %s1, %s32
  %s34 = scalar_lea.vmem [#allocation2], 1
  %s35 = scalar_lea.sflag [#allocation3], 1
  %s37 = sshll.u32 %s34, 4
  %s38 = int_to_ptr.vmem [resolvable:$true] %s37
  %40 = dma.hbm_to_vmem [thread:$0]  %s33, 32, %s38, %s35, 128, 64, 1
  %s41 = sadd.s32 %s13, 2
  %s42 = sld [smem:[#allocation6 + %s41]]
  %s43 = sshrl.u32 %s42, 3
  %s44 = sand.u32 %s42, 7
  %s45 = smul.u32 %s43, 16
  %s46 = sadd.s32 %s44, %s45
  %s47 = smul.addr %s46, 16
  %s48 = scalar_lea.hbm %s1, %s47
  %s49 = scalar_lea.vmem [#allocation2], 2
  %s50 = scalar_lea.sflag [#allocation3], 2
  %s52 = sshll.u32 %s49, 4
  %s53 = int_to_ptr.vmem [resolvable:$true] %s52
  %55 = dma.hbm_to_vmem [thread:$0]  %s48, 32, %s53, %s50, 128, 64, 1
  %s56 = smul.u32 1, 2
  %s57 = sshll.u32 %s56, 4
  %58 = dma.done [#allocation3], %s57
  %s59 = sshll.u32 %s56, 4
  %60 = dma.done %s35, %s59
  %s61 = sshll.u32 %s56, 4
  %62 = dma.done %s50, %s61
  %v63 = vld [vmem:[#allocation2] sm:$0x77]
  %v64 = vsub.f32 0.0, %v63
  %65 = vst [vmem:[#allocation2] sm:$0x77] %v64
  %s66 = sld [smem:[#allocation6 + %s13]]
  %s67 = sshrl.u32 %s66, 3
  %s68 = sand.u32 %s66, 7
  %s69 = smul.u32 %s67, 16
  %s70 = sadd.s32 %s68, %s69
  %s71 = smul.addr %s70, 16
  %s72 = scalar_lea.hbm %s2, %s71
  %s74 = sshll.u32 [#allocation2], 4
  %s75 = int_to_ptr.vmem [resolvable:$true] %s74
  %77 = dma.vmem_to_hbm [thread:$0]  %s75, 32, %s72, [#allocation4], 64, 128, 1
  %s78 = sld [smem:[#allocation6 + %s26]]
  %s79 = sshrl.u32 %s78, 3
  %s80 = sand.u32 %s78, 7
  %s81 = smul.u32 %s79, 16
  %s82 = sadd.s32 %s80, %s81
  %s83 = smul.addr %s82, 16
  %s84 = scalar_lea.hbm %s2, %s83
  %s85 = scalar_lea.sflag [#allocation4], 1
  %s87 = sshll.u32 %s34, 4
  %s88 = int_to_ptr.vmem [resolvable:$true] %s87
  %90 = dma.vmem_to_hbm [thread:$0]  %s88, 32, %s84, %s85, 64, 128, 1
  %s91 = sld [smem:[#allocation6 + %s41]]
  %s92 = sshrl.u32 %s91, 3
  %s93 = sand.u32 %s91, 7
  %s94 = smul.u32 %s92, 16
  %s95 = sadd.s32 %s93, %s94
  %s96 = smul.addr %s95, 16
  %s97 = scalar_lea.hbm %s2, %s96
  %s98 = scalar_lea.sflag [#allocation4], 2
  %s100 = sshll.u32 %s49, 4
  %s101 = int_to_ptr.vmem [resolvable:$true] %s100
  %103 = dma.vmem_to_hbm [thread:$0]  %s101, 32, %s97, %s98, 64, 128, 1
  %s104 = sshll.u32 %s56, 4
  %105 = dma.done [#allocation4], %s104
  %s106 = sshll.u32 %s56, 4
  %107 = dma.done %s85, %s106
  %s108 = sshll.u32 %s56, 4
  %109 = dma.done %s98, %s108
  %110 = vsyncmov [#allocation3]
  %s111 = vpop.sfrf %110
  %p112 = scmp.eq.s32.totalorder %s111, 0
  %p113 = pneg %p112
  %115 = shalt.err (%p113)
  %s116 = scalar_lea.sflag [#allocation3], 1
  %117 = vsyncmov %s116
  %s118 = vpop.sfrf %117
  %p119 = scmp.eq.s32.totalorder %s118, 0
  %p120 = pneg %p119
  %122 = shalt.err (%p120)
  %s123 = scalar_lea.sflag [#allocation3], 2
  %124 = vsyncmov %s123
  %s125 = vpop.sfrf %124
  %p126 = scmp.eq.s32.totalorder %s125, 0
  %p127 = pneg %p126
  %129 = shalt.err (%p127)
  %130 = vsyncmov [#allocation4]
  %s131 = vpop.sfrf %130
  %p132 = scmp.eq.s32.totalorder %s131, 0
  %p133 = pneg %p132
  %135 = shalt.err (%p133)
  %s136 = scalar_lea.sflag [#allocation4], 1
  %137 = vsyncmov %s136
  %s138 = vpop.sfrf %137
  %p139 = scmp.eq.s32.totalorder %s138, 0
  %p140 = pneg %p139
  %142 = shalt.err (%p140)
  %s143 = scalar_lea.sflag [#allocation4], 2
  %144 = vsyncmov %s143
  %s145 = vpop.sfrf %144
  %p146 = scmp.eq.s32.totalorder %s145, 0
  %p147 = pneg %p146
  %149 = shalt.err (%p147)

</llo_original>
